<compile_context>
chip_gen: v7x
topology: tpu7x:2x2x1
jax: 0.10.0
libtpu: 0.0.40
codegen_flags: <defaults>
</compile_context>

<pallas_src>
import jax
import jax.numpy as jnp
from jax.experimental import pallas as pl
from jax.experimental.pallas import tpu as pltpu

_TARGET_BLOCK_BYTES = 2 * 1024 * 1024   # ~2 MiB per block (roofline knee)
_MIN_STEPS = 8                          # aim for >= 8 grid steps (>=4 per v7x core)
_ROW_ALIGN = 32                         # sublane multiple safe for f32/bf16/int8/fp8
_ELEM_ALIGN = 32 * 128                  # 1-D block multiple (packed-tile safe)


def _mish_math(x):
    """Numerically stable Mish in f32, cast back to the input dtype.

    mish(x) = x * tanh(softplus(x)) = x * t / (t + 2)  with  t = e^x * (e^x + 2).
    Clamping the exp argument at 30 keeps t finite in f32 (exp(30)^2 ~ 1.1e26),
    and for x > 30 the ratio is exactly 1, matching tanh(softplus(x)) -> 1.
    """
    xf = x.astype(jnp.float32)
    e = jnp.exp(jnp.minimum(xf, 30.0))
    t = e * (e + 2.0)
    return (xf * (t / (t + 2.0))).astype(x.dtype)


def _mish_kernel(x_ref, o_ref):
    o_ref[...] = _mish_math(x_ref[...])


def _vmem_limit(block_bytes: int) -> int:
    # Live VMEM ~= 2 buffers x (in + out) x block = 4 x block; keep 2x headroom.
    return int(min(48 * 1024 * 1024, max(16 * 1024 * 1024, 8 * block_bytes)))


def _cost(n: int, itemsize: int) -> pl.CostEstimate:
    return pl.CostEstimate(
        flops=6 * n, transcendentals=2 * n, bytes_accessed=2 * n * itemsize
    )


def _mish_2d(x2d: jax.Array) -> jax.Array:
    """Mish over a (rows, lane_w) slab; lane_w % 128 == 0."""
    rows, lane_w = x2d.shape
    itemsize = x2d.dtype.itemsize

    if rows <= _ROW_ALIGN:
        block_rows = rows                       # full-extent block (always legal)
    else:
        block_rows = max(1, _TARGET_BLOCK_BYTES // (lane_w * itemsize))
        block_rows = min(block_rows, pl.cdiv(rows, _MIN_STEPS))   # >= ~8 steps
        block_rows = max(_ROW_ALIGN, (block_rows // _ROW_ALIGN) * _ROW_ALIGN)
        block_rows = min(block_rows, (rows // _ROW_ALIGN) * _ROW_ALIGN)

    block_bytes = block_rows * lane_w * itemsize
    grid = (pl.cdiv(rows, block_rows),)

    return pl.pallas_call(
        _mish_kernel,
        out_shape=jax.ShapeDtypeStruct((rows, lane_w), x2d.dtype),
        grid_spec=pltpu.PrefetchScalarGridSpec(
            num_scalar_prefetch=0,
            grid=grid,
            in_specs=[pl.BlockSpec((block_rows, lane_w), lambda i: (i, 0))],
            out_specs=pl.BlockSpec((block_rows, lane_w), lambda i: (i, 0)),
        ),
        compiler_params=pltpu.CompilerParams(
            dimension_semantics=("parallel",),
            vmem_limit_bytes=_vmem_limit(block_bytes),
        ),
        cost_estimate=_cost(rows * lane_w, itemsize),
    )(x2d)


def _mish_1d(flat: jax.Array) -> jax.Array:
    """Mish over a flat array of any length (tiny / non-128-aligned sizes).

    The final block may be partial; Pallas masks the out-of-bounds reads and
    discards out-of-bounds writes, so no pre-pad / post-slice HBM copies.
    """
    n = flat.shape[0]
    itemsize = flat.dtype.itemsize

    if n <= _ELEM_ALIGN:
        block = n                               # single full-extent block
    else:
        block = max(_ELEM_ALIGN, _TARGET_BLOCK_BYTES // itemsize)
        block = min(block, pl.cdiv(n, _MIN_STEPS))
        block = max(_ELEM_ALIGN, (block // _ELEM_ALIGN) * _ELEM_ALIGN)
        block = min(block, (n // _ELEM_ALIGN) * _ELEM_ALIGN)

    block_bytes = block * itemsize
    grid = (pl.cdiv(n, block),)

    return pl.pallas_call(
        _mish_kernel,
        out_shape=jax.ShapeDtypeStruct((n,), flat.dtype),
        grid_spec=pltpu.PrefetchScalarGridSpec(
            num_scalar_prefetch=0,
            grid=grid,
            in_specs=[pl.BlockSpec((block,), lambda i: (i,))],
            out_specs=pl.BlockSpec((block,), lambda i: (i,)),
        ),
        compiler_params=pltpu.CompilerParams(
            dimension_semantics=("parallel",),
            vmem_limit_bytes=_vmem_limit(block_bytes),
        ),
        cost_estimate=_cost(n, itemsize),
    )(flat)


def mish(x: jax.Array) -> jax.Array:
    """Elementwise Mish, matching torch: x * tanh(softplus(x))."""
    orig_shape = x.shape
    flat = x.reshape(-1)
    n = flat.shape[0]

    if n == 0:
        return x

    if n % 128 == 0 and n >= 8 * 128:
        # 128-aligned sizes: free reshape to a lane-dense 2-D slab.
        lane_w = 128
        for w in (512, 256):
            if n % w == 0 and n >= 8 * w:
                lane_w = w
                break
        out = _mish_2d(flat.reshape(n // lane_w, lane_w))
        return out.reshape(orig_shape)

    # Tiny or ragged (n % 128 != 0) sizes: 1-D kernel, masked final block,
    # no extra HBM passes from slicing / padding / concatenation.
    return _mish_1d(flat).reshape(orig_shape)


def _mish_ref(x):
    return x * jnp.tanh(jax.nn.softplus(x))


if __name__ == "__main__":
    key = jax.random.PRNGKey(0)
    k1, k2, k3 = jax.random.split(key, 3)
    tests = {
        # Small NCHW-like input (typical Mish-after-conv use): aligned 2-D path.
        "x": jax.random.normal(k1, (2, 4, 16, 16), dtype=jnp.float32) * 3.0,
        # Non-128-aligned element count: ragged 1-D path (masked final block).
        "x_ragged": jax.random.normal(k2, (9, 131), dtype=jnp.float32) * 3.0,
        # Tiny input: single full-extent 1-D block.
        "x_tiny": jax.random.normal(k3, (3, 5, 7), dtype=jnp.float32) * 3.0,
    }

    for name, xv in tests.items():
        y = mish(xv)
        jax.block_until_ready(y)
        y_ref = _mish_ref(xv)
        assert y.shape == xv.shape and y.dtype == xv.dtype, name
        max_err = float(jnp.max(jnp.abs(y - y_ref)))
        assert jnp.allclose(y, y_ref, atol=1e-5, rtol=1e-4), (name, max_err)

    print("KERNEL_OK")
</pallas_src>

<mosaic_0001>
module attributes {stable_mosaic.version = 11 : i64} {
  func.func @_mish_kernel(%arg0: i32, %arg1: memref<8x256xf32, #tpu.memory_space<vmem>>, %arg2: memref<8x256xf32, #tpu.memory_space<vmem>>) attributes {dimension_semantics = [#tpu.dimension_semantics<parallel>], iteration_bounds = array<i64: 1>, scalar_prefetch = 0 : i64, scratch_operands = 0 : i64, tpu.core_type = #tpu.core_type<tc>, window_params = [{transform_indices = @transform_0, window_bounds = array<i64: 8, 256>}, {transform_indices = @transform_1, window_bounds = array<i64: 8, 256>}]} {
    %c0 = arith.constant 0 : index
    %c0_0 = arith.constant 0 : index
    %0 = vector.load %arg1[%c0, %c0_0] : memref<8x256xf32, #tpu.memory_space<vmem>>, vector<8x256xf32>
    %cst = arith.constant 3.000000e+01 : f32
    %1 = vector.broadcast %cst : f32 to vector<8x256xf32>
    %2 = arith.minimumf %0, %1 : vector<8x256xf32>
    %3 = math.exp %2 : vector<8x256xf32>
    %cst_1 = arith.constant 2.000000e+00 : f32
    %4 = vector.broadcast %cst_1 : f32 to vector<8x256xf32>
    %5 = arith.addf %3, %4 : vector<8x256xf32>
    %6 = arith.mulf %3, %5 : vector<8x256xf32>
    %cst_2 = arith.constant 2.000000e+00 : f32
    %7 = vector.broadcast %cst_2 : f32 to vector<8x256xf32>
    %8 = arith.addf %6, %7 : vector<8x256xf32>
    %9 = arith.divf %6, %8 : vector<8x256xf32>
    %10 = arith.mulf %0, %9 : vector<8x256xf32>
    %c0_3 = arith.constant 0 : index
    %c0_4 = arith.constant 0 : index
    %11 = vector.load %arg2[%c0_3, %c0_4] : memref<8x256xf32, #tpu.memory_space<vmem>>, vector<8x256xf32>
    tpu.vector_store %arg2[%c0_3, %c0_4], %10 {strides = array<i32>} : memref<8x256xf32, #tpu.memory_space<vmem>>, vector<8x256xf32>,
    return
  }
  func.func @transform_0(%arg0: i32) -> (i32, i32) {
    %c0_i32 = arith.constant 0 : i32
    %c0_i32_0 = arith.constant 0 : i32
    return %arg0, %c0_i32 : i32, i32
  }
  func.func @transform_1(%arg0: i32) -> (i32, i32) {
    %c0_i32 = arith.constant 0 : i32
    %c0_i32_0 = arith.constant 0 : i32
    return %arg0, %c0_i32 : i32, i32
  }
}

</mosaic_0001>

<llo_original>
// kernel: tpu_custom_call.1
$region0: #{tpu_custom_call.1}
  #allocation0 [shape = 'u32[]', space=smem, size = 0x4, offset = 0x4, fixed_abs, tag = 'smem constant byte address 0x4 - core index']
  #allocation1 [shape = 'u32[144,128]{1,0:T(1,128)}', space=vmem, size = 0x12000, scoped, tag = 'internal scratch']
  %s0 = inlined_call_operand.hbm [shape: f32[8,256], index: 0, kind: input, shape index: {}]
  %s1 = inlined_call_operand.hbm [shape: f32[8,256], index: 1, kind: output, shape index: {}]
  %s2 = sld [smem:[#allocation0]]
  $region18: #{tpu_custom_call.1} parent=0
    _
  %s4 = ssub.s32 1, %s2
  %s5 = scalar_select 0, %s4, %s2
  $region1: #{tpu_custom_call.1} parent=0
    #allocation2 [shape = 'u8[8192]{0}', space=vmem, size = 0x2000, scoped, tag = 'input window, operand 0, single buffered']
    #allocation3 [shape = 's32[1]{0}', space=sflag, size = 0x4, scoped, tag = 'scoped memory for tpu_custom_call.1']
    #allocation4 [shape = 's32[1]{0}', space=sflag, size = 0x4, scoped, tag = 'scoped memory for tpu_custom_call.1']
    #allocation5 [shape = 'u8[8192]{0}', space=vmem, size = 0x2000, scoped, tag = 'output window, operand 0, single buffered']
    %6 = vsyncpa [#allocation3], 0
    %7 = vsyncpa [#allocation4], 0
    // Predicated region
    $region2: #{tpu_custom_call.1} parent=1 // pred_check
      _
    $region3: #{tpu_custom_call.1} parent=1 // pred_check_branch
      %9 = sbr.rel (0) target = $region5
    $region4: #{tpu_custom_call.1} parent=1 // pred_region
      %s11 = ssub.s32 256, 256
      %12 = vsyncadd [#allocation3], %s11
      %s14 = sshll.u32 [#allocation2], 4
      %s15 = int_to_ptr.vmem [resolvable:$true] %s14
      %17 = dma.hbm_to_vmem [thread:$0]  %s0, 256, %s15, [#allocation3]
    $region5: #{tpu_custom_call.1} parent=1 // pred_fallthru
      _
    // Predicated region
    $region6: #{tpu_custom_call.1} parent=1 // pred_check
      _
    $region7: #{tpu_custom_call.1} parent=1 // pred_check_branch
      %19 = sbr.rel (0) target = $region9
    $region8: #{tpu_custom_call.1} parent=1 // pred_region
      %20 = dma.done [#allocation3], 256
    $region9: #{tpu_custom_call.1} parent=1 // pred_fallthru
      _
    %v21 = vld [vmem:[#allocation2] sm:$0xff]
    %v22 = vld [vmem:[#allocation2 + $0x8] sm:$0xff]
    %v23 = vmin.f32 %v21, 30.0
    %v24 = vmin.f32 %v22, 30.0
    %v25 = vmul.f32 %v23, 1.442695
    %v26 = vpow.pop %v25
    %v27 = vmul.f32 %v24, 1.442695
    %v28 = vpow.pop %v27
    %v29 = vadd.f32 %v26, 2.0
    %v30 = vadd.f32 %v28, 2.0
    %v31 = vmul.f32 %v26, %v29
    %v32 = vmul.f32 %v28, %v30
    %v33 = vadd.f32 %v31, 2.0
    %v34 = vadd.f32 %v32, 2.0
    %v35 = vrcp.pop %v33
    %v36 = vmul.f32 %v31, %v35
    %v37 = vrcp.pop %v34
    %v38 = vmul.f32 %v32, %v37
    %v39 = vmul.f32 %v21, %v36
    %v40 = vmul.f32 %v22, %v38
    %41 = vst [vmem:[#allocation5] sm:$0xff] %v39
    %42 = vst [vmem:[#allocation5 + $0x8] sm:$0xff] %v40
    // Predicated region
    $region10: #{tpu_custom_call.1} parent=1 // pred_check
      _
    $region11: #{tpu_custom_call.1} parent=1 // pred_check_branch
      %44 = sbr.rel (0) target = $region13
    $region12: #{tpu_custom_call.1} parent=1 // pred_region
      %s46 = ssub.s32 256, 256
      %47 = vsyncadd [#allocation4], %s46
      %s49 = sshll.u32 [#allocation5], 4
      %s50 = int_to_ptr.vmem [resolvable:$true] %s49
      %52 = dma.vmem_to_hbm [thread:$0]  %s50, 256, %s1, [#allocation4]
    $region13: #{tpu_custom_call.1} parent=1 // pred_fallthru
      _
    // Predicated region
    $region14: #{tpu_custom_call.1} parent=1 // pred_check
      _
    $region15: #{tpu_custom_call.1} parent=1 // pred_check_branch
      %54 = sbr.rel (0) target = $region17
    $region16: #{tpu_custom_call.1} parent=1 // pred_region
      %55 = dma.done [#allocation4], 256
    $region17: #{tpu_custom_call.1} parent=1 // pred_fallthru
      _
    %56 = vsyncpa [#allocation3], 1
    %57 = vsyncpa [#allocation4], 1

</llo_original>
